<compile_context>
chip_gen: v7x
topology: tpu7x:2x2x1
jax: 0.10.0
libtpu: 0.0.40
codegen_flags: <defaults>
</compile_context>

<pallas_src>
import jax
import jax.numpy as jnp
from jax.experimental import pallas as pl
from jax.experimental.pallas import tpu as pltpu

_LANE = 128
_PREFERRED_LANES = (4096, 2048, 1024, 512, 256, 128)
_TARGET_BLOCK_BYTES = 4 * 1024 * 1024      # ~4 MiB per block
_MIN_GRID_STEPS = 4                        # >= 2 TCs (v7x) + pipeline overlap
_VMEM_LIMIT_BYTES = 32 * 1024 * 1024       # 4 x 4 MiB buffers fit w/ headroom


def _multispike_kernel(x_ref, o_ref):
    """Elementwise floor(clamp(x, 0, 4) + 0.5) on one lane-dense block."""
    x = x_ref[...].astype(jnp.float32)     # f32 compute: free on VPU, parity-safe
    o_ref[...] = jnp.floor(jnp.clip(x, 0.0, 4.0) + 0.5).astype(o_ref.dtype)


def _round_up(v, m):
    return -(-v // m) * m


def _round_down(v, m):
    return (v // m) * m


def _pick_lanes(n):
    """Widest preferred 128-multiple lane width that divides n, else None."""
    for cand in _PREFERRED_LANES:
        if n % cand == 0:
            return cand
    return None


def _block_rows_for(rows, lanes, itemsize):
    """Dtype-aware block sizing: ~4 MiB blocks, but keep >= 4 grid steps."""
    sub_min = 8 * max(1, 4 // itemsize)    # 8 (f32), 16 (bf16), 32 (int8/fp8)
    if rows <= sub_min:
        return rows                        # single full-extent block
    by_bytes = max(sub_min,
                   _round_down(_TARGET_BLOCK_BYTES // (lanes * itemsize), sub_min))
    by_steps = max(sub_min, _round_up(-(-rows // _MIN_GRID_STEPS), sub_min))
    return min(by_bytes, by_steps, _round_down(rows, sub_min))


def _multispike_2d(x2):
    """Run the kernel over a lane-dense (rows, lanes) slab."""
    rows, lanes = x2.shape
    itemsize = jnp.dtype(x2.dtype).itemsize
    block_rows = _block_rows_for(rows, lanes, itemsize)
    grid = (pl.cdiv(rows, block_rows),)
    n = rows * lanes
    return pl.pallas_call(
        _multispike_kernel,
        out_shape=jax.ShapeDtypeStruct((rows, lanes), x2.dtype),
        grid=grid,
        in_specs=[pl.BlockSpec((block_rows, lanes), lambda i: (i, 0))],
        out_specs=pl.BlockSpec((block_rows, lanes), lambda i: (i, 0)),
        compiler_params=pltpu.CompilerParams(
            dimension_semantics=("parallel",),
            vmem_limit_bytes=_VMEM_LIMIT_BYTES),
        cost_estimate=pl.CostEstimate(
            flops=3 * n, transcendentals=0, bytes_accessed=2 * n * itemsize),
    )(x2)


def _multispike_jnp(x):
    """Pure-jnp fallback for tiny/ragged tails (same math as the kernel)."""
    return jnp.floor(jnp.clip(x.astype(jnp.float32), 0.0, 4.0) + 0.5).astype(x.dtype)


def multispike(x):
    """Multispike.forward for an arbitrary-shaped float tensor."""
    orig_shape = x.shape
    n = x.size
    if n == 0:
        return x
    flat = x.reshape(-1)                   # row-major reshape: no data movement

    lanes = _pick_lanes(n)
    if lanes is not None:
        rows = n // lanes
        return _multispike_2d(flat.reshape(rows, lanes)).reshape(orig_shape)

    # Ragged element count (n % 128 != 0): kernel handles the 128-aligned
    # prefix zero-copy; the <128-element tail is handled with plain jnp.
    # No full-tensor pad copy, no oversized output slice.
    n_main = _round_down(n, _LANE)
    tail = _multispike_jnp(flat[n_main:])
    if n_main == 0:
        return tail.reshape(orig_shape)
    main_lanes = _pick_lanes(n_main)
    rows = n_main // main_lanes
    main = _multispike_2d(flat[:n_main].reshape(rows, main_lanes)).reshape(-1)
    return jnp.concatenate([main, tail]).reshape(orig_shape)


def reference_multispike(x):
    """Pure-JAX reference: torch.floor(torch.clamp(x, 0, 4) + 0.5)."""
    return jnp.floor(jnp.clip(x, 0.0, 4.0) + 0.5)


if __name__ == "__main__":
    # Small voxel-feature-like shape: batch=2, channels=32, grid 32x16x16.
    N, C, D, H, W = 2, 32, 32, 16, 16
    key = jax.random.PRNGKey(0)
    x = 3.0 * jax.random.normal(key, (N, C, D, H, W), jnp.float32) + 1.0

    # Inject exact boundary / half-integer values to exercise clamp + rounding.
    edge = jnp.array([-2.0, -0.5, 0.0, 0.25, 0.5, 1.5, 2.5, 3.5, 4.0, 4.5,
                      5.0, 100.0], jnp.float32)
    x = x.reshape(-1).at[:edge.size].set(edge).reshape(N, C, D, H, W)

    run = jax.jit(multispike)
    out = jax.block_until_ready(run(x))
    ref = reference_multispike(x)
    assert out.shape == x.shape, out.shape
    assert out.dtype == x.dtype, out.dtype
    if not jnp.array_equal(out, ref):
        err = jnp.max(jnp.abs(out - ref))
        raise AssertionError(f"mismatch vs reference, max abs err = {err}")

    # Ragged (non-128-aligned) element count: aligned prefix via kernel + jnp tail.
    xr = 3.0 * jax.random.normal(jax.random.PRNGKey(1), (7, 100), jnp.float32)
    out_r = jax.block_until_ready(jax.jit(multispike)(xr))
    if not jnp.array_equal(out_r, reference_multispike(xr)):
        raise AssertionError("ragged-path mismatch vs reference")

    print("KERNEL_OK")
</pallas_src>

<mosaic_0001>
module attributes {stable_mosaic.version = 11 : i64} {
  func.func @_multispike_kernel(%arg0: i32, %arg1: memref<32x4096xf32, #tpu.memory_space<vmem>>, %arg2: memref<32x4096xf32, #tpu.memory_space<vmem>>) attributes {dimension_semantics = [#tpu.dimension_semantics<parallel>], iteration_bounds = array<i64: 4>, scalar_prefetch = 0 : i64, scratch_operands = 0 : i64, tpu.core_type = #tpu.core_type<tc>, window_params = [{transform_indices = @transform_0, window_bounds = array<i64: 32, 4096>}, {transform_indices = @transform_1, window_bounds = array<i64: 32, 4096>}]} {
    %c0 = arith.constant 0 : index
    %c0_0 = arith.constant 0 : index
    %0 = vector.load %arg1[%c0, %c0_0] : memref<32x4096xf32, #tpu.memory_space<vmem>>, vector<32x4096xf32>
    %cst = arith.constant 0.000000e+00 : f32
    %cst_1 = arith.constant 4.000000e+00 : f32
    %1 = vector.broadcast %cst : f32 to vector<32x4096xf32>
    %2 = arith.maximumf %1, %0 : vector<32x4096xf32>
    %3 = vector.broadcast %cst_1 : f32 to vector<32x4096xf32>
    %4 = arith.minimumf %3, %2 : vector<32x4096xf32>
    %cst_2 = arith.constant 5.000000e-01 : f32
    %5 = vector.broadcast %cst_2 : f32 to vector<32x4096xf32>
    %6 = arith.addf %4, %5 : vector<32x4096xf32>
    %7 = math.floor %6 : vector<32x4096xf32>
    %c0_3 = arith.constant 0 : index
    %c0_4 = arith.constant 0 : index
    %8 = vector.load %arg2[%c0_3, %c0_4] : memref<32x4096xf32, #tpu.memory_space<vmem>>, vector<32x4096xf32>
    tpu.vector_store %arg2[%c0_3, %c0_4], %7 {strides = array<i32>} : memref<32x4096xf32, #tpu.memory_space<vmem>>, vector<32x4096xf32>,
    return
  }
  func.func @transform_0(%arg0: i32) -> (i32, i32) {
    %c0_i32 = arith.constant 0 : i32
    %c0_i32_0 = arith.constant 0 : i32
    return %arg0, %c0_i32 : i32, i32
  }
  func.func @transform_1(%arg0: i32) -> (i32, i32) {
    %c0_i32 = arith.constant 0 : i32
    %c0_i32_0 = arith.constant 0 : i32
    return %arg0, %c0_i32 : i32, i32
  }
}

</mosaic_0001>

<llo_original>
// kernel: multispike.1
$region0: #{multispike.1}
  #allocation0 [shape = 'u32[]', space=smem, size = 0x4, offset = 0x4, fixed_abs, tag = 'smem constant byte address 0x4 - core index']
  #allocation1 [shape = 'u32[144,128]{1,0:T(1,128)}', space=vmem, size = 0x12000, scoped, tag = 'internal scratch']
  %s0 = inlined_call_operand.vmem [shape: f32[128,4096], index: 0, kind: input, shape index: {}]
  %s1 = inlined_call_operand.vmem [shape: f32[128,4096], index: 1, kind: output, shape index: {}]
  %s2 = sld [smem:[#allocation0]]
  $region37: #{multispike.1} parent=0
    _
  %s4 = ssub.s32 1, %s2
  %s5 = scalar_select 0, %s4, %s2
  loop: start=0, step=1, limit=6
  $region2: #{multispike.1} parent=0 // loop_pre_header
    _
  $region3: #{multispike.1} parent=0 // loop_header
    %s7 = sphi 0, %s11
    %p8 = scmp.ge.s32.totalorder %s7, 6
    %s17 = sphi 0, %s19
    %s20 = sphi 0, %s17
    %s21 = sphi 0, %s20
    %s37 = sphi 0, %s21
    %s43 = sphi 0, %s45
    %s46 = sphi 0, %s43
    %s47 = sphi 0, %s46
    %s63 = sphi 0, %s47
  $region4: #{multispike.1} parent=0 // loop_header_branch
    %10 = sbr.rel (%p8) target = $region8
  $region5: #{multispike.1} parent=0 // loop_body
    %s12 = ssub.s32 %s7, 1
    %s13 = ssub.s32 %s7, 2
    %s14 = sadd.s32 %s7, 1
    %s15 = ssub.s32 %s7, %s14
    %p16 = scmp.eq.s32.totalorder %s15, 0
    %s18 = sadd.s32 %s17, 1
    %s19 = scalar_select %p16, %s17, %s18
    %p22 = pneg %p16
    %p23 = scmp.eq.s32.totalorder %s7, 3
    %p24 = por %p22, %p23
    %p25 = scmp.ne.s32.totalorder %s17, %s20
    %p26 = scmp.eq.s32.totalorder %s7, 0
    %p27 = por %p25, %p26
    %p28 = scmp.ne.s32.totalorder %s17, %s20
    %p29 = scmp.eq.s32.totalorder %s12, 3
    %p30 = por %p28, %p29
    %p31 = scmp.ne.s32.totalorder %s20, %s21
    %p32 = scmp.eq.s32.totalorder %s12, 0
    %p33 = por %p31, %p32
    %p34 = scmp.ne.s32.totalorder %s20, %s21
    %p35 = scmp.eq.s32.totalorder %s13, 3
    %p36 = por %p34, %p35
    %p38 = scmp.ne.s32.totalorder %s21, %s37
    %p39 = scmp.eq.s32.totalorder %s13, 0
    %p40 = por %p38, %p39
    %s41 = ssub.s32 %s7, %s14
    %p42 = scmp.eq.s32.totalorder %s41, 0
    %s44 = sadd.s32 %s43, 1
    %s45 = scalar_select %p42, %s43, %s44
    %p48 = pneg %p42
    %p49 = scmp.eq.s32.totalorder %s7, 3
    %p50 = por %p48, %p49
    %p51 = scmp.ne.s32.totalorder %s43, %s46
    %p52 = scmp.eq.s32.totalorder %s7, 0
    %p53 = por %p51, %p52
    %p54 = scmp.ne.s32.totalorder %s43, %s46
    %p55 = scmp.eq.s32.totalorder %s12, 3
    %p56 = por %p54, %p55
    %p57 = scmp.ne.s32.totalorder %s46, %s47
    %p58 = scmp.eq.s32.totalorder %s12, 0
    %p59 = por %p57, %p58
    %p60 = scmp.ne.s32.totalorder %s46, %s47
    %p61 = scmp.eq.s32.totalorder %s13, 3
    %p62 = por %p60, %p61
    %p64 = scmp.ne.s32.totalorder %s47, %s63
    %p65 = scmp.eq.s32.totalorder %s13, 0
    %p66 = por %p64, %p65
    %p67 = scmp.le.s32.totalorder 1, %s7
    %p68 = scmp.lt.s32.totalorder %s7, 5
    %p69 = pnand %p67, %p68
    %p70 = pneg %p69
    // Predicated region
    $region9: #{multispike.1} parent=5 // pred_check
      _
    $region10: #{multispike.1} parent=5 // pred_check_branch
      %72 = sbr.rel (%p69) target = $region12
    $region11: #{multispike.1} parent=5 // pred_region
      %s73 = ssub.s32 %s7, 1
    $region12: #{multispike.1} parent=5 // pred_fallthru
      _
    %p74 = scmp.lt.s32.totalorder %s7, 4
    // Predicated region
    $region13: #{multispike.1} parent=5 // pred_check
      %p75 = pneg %p74
    $region14: #{multispike.1} parent=5 // pred_check_branch
      %77 = sbr.rel (%p75) target = $region16
    $region15: #{multispike.1} parent=5 // pred_region
      // Predicated region
      $region17: #{multispike.1} parent=15 // pred_check
        %p78 = pneg %p27
      $region18: #{multispike.1} parent=15 // pred_check_branch
        %80 = sbr.rel (%p78) target = $region20
      $region19: #{multispike.1} parent=15 // pred_region
        %s81 = smul.u32 4, %s7
        %p82 = scmp.lt.s32.totalorder %s81, 15
        %s83 = scalar_select %p82, %s81, 15
        %s84 = smul.addr %s83, 32
        %s85 = smul.addr %s84, 8
        %s86 = scalar_lea.vmem %s0, %s85
        %s87 = smul.u32 4, %s7
      $region20: #{multispike.1} parent=15 // pred_fallthru
        _
    $region16: #{multispike.1} parent=5 // pred_fallthru
      _
    %p88 = scmp.le.s32.totalorder 1, %s7
    %p89 = scmp.lt.s32.totalorder %s7, 5
    %p90 = pnand %p88, %p89
    %p91 = pneg %p90
    // Predicated region
    $region21: #{multispike.1} parent=5 // pred_check
      _
    $region22: #{multispike.1} parent=5 // pred_check_branch
      %93 = sbr.rel (%p90) target = $region24
    $region23: #{multispike.1} parent=5 // pred_region
      %s94 = ssub.s32 %s7, 1
      %s95 = smul.u32 4, %s12
      %p96 = scmp.lt.s32.totalorder %s95, 15
      %s97 = scalar_select %p96, %s95, 15
      %s98 = smul.addr %s97, 32
      %s99 = smul.addr %s98, 8
      %s100 = scalar_lea.vmem %s0, %s99
      %p101 = pneg %p33
      %p102 = pneg %p30
      %p103 = pneg %p59
      %p104 = pneg %p56
      %s105 = smul.u32 4, %s12
      %p106 = scmp.lt.s32.totalorder %s105, 15
      %s107 = scalar_select %p106, %s105, 15
      %s108 = smul.addr %s107, 32
      %s109 = smul.addr %s108, 8
      %s110 = scalar_lea.vmem %s1, %s109
      %s111 = smul.u32 4, %s12
      %p112 = scmp.lt.s32.totalorder %s111, 15
      %s113 = scalar_select %p112, %s111, 15
      %s114 = smul.addr %s113, 32
      %s115 = smul.addr %s114, 8
      %s116 = scalar_lea.vmem %s0, %s115
      %s117 = smul.u32 4, %s12
      %s118 = smul.u32 4, %s12
      %p119 = scmp.lt.s32.totalorder %s118, 15
      %s120 = scalar_select %p119, %s118, 15
      %s121 = smul.addr %s120, 32
      %s122 = smul.addr %s121, 8
      %s123 = scalar_lea.vmem %s1, %s122
      %s124 = smul.u32 4, %s12
      %v125 = vld [vmem:[%s116] sm:$0xff]
      %v126 = vld [vmem:[%s116 + $0x8] sm:$0xff]
      %v127 = vld [vmem:[%s116 + $0x10] sm:$0xff]
      %v128 = vld [vmem:[%s116 + $0x18] sm:$0xff]
      %v129 = vld [vmem:[%s116 + $0x20] sm:$0xff]
      %v130 = vld [vmem:[%s116 + $0x28] sm:$0xff]
      %v131 = vld [vmem:[%s116 + $0x30] sm:$0xff]
      %v132 = vld [vmem:[%s116 + $0x38] sm:$0xff]
      %v133 = vld [vmem:[%s116 + $0x40] sm:$0xff]
      %v134 = vld [vmem:[%s116 + $0x48] sm:$0xff]
      %v135 = vld [vmem:[%s116 + $0x50] sm:$0xff]
      %v136 = vld [vmem:[%s116 + $0x58] sm:$0xff]
      %v137 = vld [vmem:[%s116 + $0x60] sm:$0xff]
      %v138 = vld [vmem:[%s116 + $0x68] sm:$0xff]
      %v139 = vld [vmem:[%s116 + $0x70] sm:$0xff]
      %v140 = vld [vmem:[%s116 + $0x78] sm:$0xff]
      %v141 = vld [vmem:[%s116 + $0x80] sm:$0xff]
      %v142 = vld [vmem:[%s116 + $0x88] sm:$0xff]
      %v143 = vld [vmem:[%s116 + $0x90] sm:$0xff]
      %v144 = vld [vmem:[%s116 + $0x98] sm:$0xff]
      %v145 = vld [vmem:[%s116 + $0xa0] sm:$0xff]
      %v146 = vld [vmem:[%s116 + $0xa8] sm:$0xff]
      %v147 = vld [vmem:[%s116 + $0xb0] sm:$0xff]
      %v148 = vld [vmem:[%s116 + $0xb8] sm:$0xff]
      %v149 = vld [vmem:[%s116 + $0xc0] sm:$0xff]
      %v150 = vld [vmem:[%s116 + $0xc8] sm:$0xff]
      %v151 = vld [vmem:[%s116 + $0xd0] sm:$0xff]
      %v152 = vld [vmem:[%s116 + $0xd8] sm:$0xff]
      %v153 = vld [vmem:[%s116 + $0xe0] sm:$0xff]
      %v154 = vld [vmem:[%s116 + $0xe8] sm:$0xff]
      %v155 = vld [vmem:[%s116 + $0xf0] sm:$0xff]
      %v156 = vld [vmem:[%s116 + $0xf8] sm:$0xff]
      %v157 = vld [vmem:[%s116 + $0x100] sm:$0xff]
      %v158 = vld [vmem:[%s116 + $0x108] sm:$0xff]
      %v159 = vld [vmem:[%s116 + $0x110] sm:$0xff]
      %v160 = vld [vmem:[%s116 + $0x118] sm:$0xff]
      %v161 = vld [vmem:[%s116 + $0x120] sm:$0xff]
      %v162 = vld [vmem:[%s116 + $0x128] sm:$0xff]
      %v163 = vld [vmem:[%s116 + $0x130] sm:$0xff]
      %v164 = vld [vmem:[%s116 + $0x138] sm:$0xff]
      %v165 = vld [vmem:[%s116 + $0x140] sm:$0xff]
      %v166 = vld [vmem:[%s116 + $0x148] sm:$0xff]
      %v167 = vld [vmem:[%s116 + $0x150] sm:$0xff]
      %v168 = vld [vmem:[%s116 + $0x158] sm:$0xff]
      %v169 = vld [vmem:[%s116 + $0x160] sm:$0xff]
      %v170 = vld [vmem:[%s116 + $0x168] sm:$0xff]
      %v171 = vld [vmem:[%s116 + $0x170] sm:$0xff]
      %v172 = vld [vmem:[%s116 + $0x178] sm:$0xff]
      %v173 = vld [vmem:[%s116 + $0x180] sm:$0xff]
      %v174 = vld [vmem:[%s116 + $0x188] sm:$0xff]
      %v175 = vld [vmem:[%s116 + $0x190] sm:$0xff]
      %v176 = vld [vmem:[%s116 + $0x198] sm:$0xff]
      %v177 = vld [vmem:[%s116 + $0x1a0] sm:$0xff]
      %v178 = vld [vmem:[%s116 + $0x1a8] sm:$0xff]
      %v179 = vld [vmem:[%s116 + $0x1b0] sm:$0xff]
      %v180 = vld [vmem:[%s116 + $0x1b8] sm:$0xff]
      %v181 = vld [vmem:[%s116 + $0x1c0] sm:$0xff]
      %v182 = vld [vmem:[%s116 + $0x1c8] sm:$0xff]
      %v183 = vld [vmem:[%s116 + $0x1d0] sm:$0xff]
      %v184 = vld [vmem:[%s116 + $0x1d8] sm:$0xff]
      %v185 = vld [vmem:[%s116 + $0x1e0] sm:$0xff]
      %v186 = vld [vmem:[%s116 + $0x1e8] sm:$0xff]
      %v187 = vld [vmem:[%s116 + $0x1f0] sm:$0xff]
      %v188 = vld [vmem:[%s116 + $0x1f8] sm:$0xff]
      %v189 = vld [vmem:[%s116 + $0x200] sm:$0xff]
      %v190 = vld [vmem:[%s116 + $0x208] sm:$0xff]
      %v191 = vld [vmem:[%s116 + $0x210] sm:$0xff]
      %v192 = vld [vmem:[%s116 + $0x218] sm:$0xff]
      %v193 = vld [vmem:[%s116 + $0x220] sm:$0xff]
      %v194 = vld [vmem:[%s116 + $0x228] sm:$0xff]
      %v195 = vld [vmem:[%s116 + $0x230] sm:$0xff]
      %v196 = vld [vmem:[%s116 + $0x238] sm:$0xff]
      %v197 = vld [vmem:[%s116 + $0x240] sm:$0xff]
      %v198 = vld [vmem:[%s116 + $0x248] sm:$0xff]
      %v199 = vld [vmem:[%s116 + $0x250] sm:$0xff]
      %v200 = vld [vmem:[%s116 + $0x258] sm:$0xff]
      %v201 = vld [vmem:[%s116 + $0x260] sm:$0xff]
      %v202 = vld [vmem:[%s116 + $0x268] sm:$0xff]
      %v203 = vld [vmem:[%s116 + $0x270] sm:$0xff]
      %v204 = vld [vmem:[%s116 + $0x278] sm:$0xff]
      %v205 = vld [vmem:[%s116 + $0x280] sm:$0xff]
      %v206 = vld [vmem:[%s116 + $0x288] sm:$0xff]
      %v207 = vld [vmem:[%s116 + $0x290] sm:$0xff]
      %v208 = vld [vmem:[%s116 + $0x298] sm:$0xff]
      %v209 = vld [vmem:[%s116 + $0x2a0] sm:$0xff]
      %v210 = vld [vmem:[%s116 + $0x2a8] sm:$0xff]
      %v211 = vld [vmem:[%s116 + $0x2b0] sm:$0xff]
      %v212 = vld [vmem:[%s116 + $0x2b8] sm:$0xff]
      %v213 = vld [vmem:[%s116 + $0x2c0] sm:$0xff]
      %v214 = vld [vmem:[%s116 + $0x2c8] sm:$0xff]
      %v215 = vld [vmem:[%s116 + $0x2d0] sm:$0xff]
      %v216 = vld [vmem:[%s116 + $0x2d8] sm:$0xff]
      %v217 = vld [vmem:[%s116 + $0x2e0] sm:$0xff]
      %v218 = vld [vmem:[%s116 + $0x2e8] sm:$0xff]
      %v219 = vld [vmem:[%s116 + $0x2f0] sm:$0xff]
      %v220 = vld [vmem:[%s116 + $0x2f8] sm:$0xff]
      %v221 = vld [vmem:[%s116 + $0x300] sm:$0xff]
      %v222 = vld [vmem:[%s116 + $0x308] sm:$0xff]
      %v223 = vld [vmem:[%s116 + $0x310] sm:$0xff]
      %v224 = vld [vmem:[%s116 + $0x318] sm:$0xff]
      %v225 = vld [vmem:[%s116 + $0x320] sm:$0xff]
      %v226 = vld [vmem:[%s116 + $0x328] sm:$0xff]
      %v227 = vld [vmem:[%s116 + $0x330] sm:$0xff]
      %v228 = vld [vmem:[%s116 + $0x338] sm:$0xff]
      %v229 = vld [vmem:[%s116 + $0x340] sm:$0xff]
      %v230 = vld [vmem:[%s116 + $0x348] sm:$0xff]
      %v231 = vld [vmem:[%s116 + $0x350] sm:$0xff]
      %v232 = vld [vmem:[%s116 + $0x358] sm:$0xff]
      %v233 = vld [vmem:[%s116 + $0x360] sm:$0xff]
      %v234 = vld [vmem:[%s116 + $0x368] sm:$0xff]
      %v235 = vld [vmem:[%s116 + $0x370] sm:$0xff]
      %v236 = vld [vmem:[%s116 + $0x378] sm:$0xff]
      %v237 = vld [vmem:[%s116 + $0x380] sm:$0xff]
      %v238 = vld [vmem:[%s116 + $0x388] sm:$0xff]
      %v239 = vld [vmem:[%s116 + $0x390] sm:$0xff]
      %v240 = vld [vmem:[%s116 + $0x398] sm:$0xff]
      %v241 = vld [vmem:[%s116 + $0x3a0] sm:$0xff]
      %v242 = vld [vmem:[%s116 + $0x3a8] sm:$0xff]
      %v243 = vld [vmem:[%s116 + $0x3b0] sm:$0xff]
      %v244 = vld [vmem:[%s116 + $0x3b8] sm:$0xff]
      %v245 = vld [vmem:[%s116 + $0x3c0] sm:$0xff]
      %v246 = vld [vmem:[%s116 + $0x3c8] sm:$0xff]
      %v247 = vld [vmem:[%s116 + $0x3d0] sm:$0xff]
      %v248 = vld [vmem:[%s116 + $0x3d8] sm:$0xff]
      %v249 = vld [vmem:[%s116 + $0x3e0] sm:$0xff]
      %v250 = vld [vmem:[%s116 + $0x3e8] sm:$0xff]
      %v251 = vld [vmem:[%s116 + $0x3f0] sm:$0xff]
      %v252 = vld [vmem:[%s116 + $0x3f8] sm:$0xff]
      %v253 = vmax.f32 %v125, 0.0
      %v254 = vmax.f32 %v126, 0.0
      %v255 = vmax.f32 %v127, 0.0
      %v256 = vmax.f32 %v128, 0.0
      %v257 = vmax.f32 %v129, 0.0
      %v258 = vmax.f32 %v130, 0.0
      %v259 = vmax.f32 %v131, 0.0
      %v260 = vmax.f32 %v132, 0.0
      %v261 = vmax.f32 %v133, 0.0
      %v262 = vmax.f32 %v134, 0.0
      %v263 = vmax.f32 %v135, 0.0
      %v264 = vmax.f32 %v136, 0.0
      %v265 = vmax.f32 %v137, 0.0
      %v266 = vmax.f32 %v138, 0.0
      %v267 = vmax.f32 %v139, 0.0
      %v268 = vmax.f32 %v140, 0.0
      %v269 = vmax.f32 %v141, 0.0
      %v270 = vmax.f32 %v142, 0.0
      %v271 = vmax.f32 %v143, 0.0
      %v272 = vmax.f32 %v144, 0.0
      %v273 = vmax.f32 %v145, 0.0
      %v274 = vmax.f32 %v146, 0.0
      %v275 = vmax.f32 %v147, 0.0
      %v276 = vmax.f32 %v148, 0.0
      %v277 = vmax.f32 %v149, 0.0
      %v278 = vmax.f32 %v150, 0.0
      %v279 = vmax.f32 %v151, 0.0
      %v280 = vmax.f32 %v152, 0.0
      %v281 = vmax.f32 %v153, 0.0
      %v282 = vmax.f32 %v154, 0.0
      %v283 = vmax.f32 %v155, 0.0
      %v284 = vmax.f32 %v156, 0.0
      %v285 = vmax.f32 %v157, 0.0
      %v286 = vmax.f32 %v158, 0.0
      %v287 = vmax.f32 %v159, 0.0
      %v288 = vmax.f32 %v160, 0.0
      %v289 = vmax.f32 %v161, 0.0
      %v290 = vmax.f32 %v162, 0.0
      %v291 = vmax.f32 %v163, 0.0
      %v292 = vmax.f32 %v164, 0.0
      %v293 = vmax.f32 %v165, 0.0
      %v294 = vmax.f32 %v166, 0.0
      %v295 = vmax.f32 %v167, 0.0
      %v296 = vmax.f32 %v168, 0.0
      %v297 = vmax.f32 %v169, 0.0
      %v298 = vmax.f32 %v170, 0.0
      %v299 = vmax.f32 %v171, 0.0
      %v300 = vmax.f32 %v172, 0.0
      %v301 = vmax.f32 %v173, 0.0
      %v302 = vmax.f32 %v174, 0.0
      %v303 = vmax.f32 %v175, 0.0
      %v304 = vmax.f32 %v176, 0.0
      %v305 = vmax.f32 %v177, 0.0
      %v306 = vmax.f32 %v178, 0.0
      %v307 = vmax.f32 %v179, 0.0
      %v308 = vmax.f32 %v180, 0.0
      %v309 = vmax.f32 %v181, 0.0
      %v310 = vmax.f32 %v182, 0.0
      %v311 = vmax.f32 %v183, 0.0
      %v312 = vmax.f32 %v184, 0.0
      %v313 = vmax.f32 %v185, 0.0
      %v314 = vmax.f32 %v186, 0.0
      %v315 = vmax.f32 %v187, 0.0
      %v316 = vmax.f32 %v188, 0.0
      %v317 = vmax.f32 %v189, 0.0
      %v318 = vmax.f32 %v190, 0.0
      %v319 = vmax.f32 %v191, 0.0
      %v320 = vmax.f32 %v192, 0.0
      %v321 = vmax.f32 %v193, 0.0
      %v322 = vmax.f32 %v194, 0.0
      %v323 = vmax.f32 %v195, 0.0
      %v324 = vmax.f32 %v196, 0.0
      %v325 = vmax.f32 %v197, 0.0
      %v326 = vmax.f32 %v198, 0.0
      %v327 = vmax.f32 %v199, 0.0
      %v328 = vmax.f32 %v200, 0.0
      %v329 = vmax.f32 %v201, 0.0
      %v330 = vmax.f32 %v202, 0.0
      %v331 = vmax.f32 %v203, 0.0
      %v332 = vmax.f32 %v204, 0.0
      %v333 = vmax.f32 %v205, 0.0
      %v334 = vmax.f32 %v206, 0.0
      %v335 = vmax.f32 %v207, 0.0
      %v336 = vmax.f32 %v208, 0.0
      %v337 = vmax.f32 %v209, 0.0
      %v338 = vmax.f32 %v210, 0.0
      %v339 = vmax.f32 %v211, 0.0
      %v340 = vmax.f32 %v212, 0.0
      %v341 = vmax.f32 %v213, 0.0
      %v342 = vmax.f32 %v214, 0.0
      %v343 = vmax.f32 %v215, 0.0
      %v344 = vmax.f32 %v216, 0.0
      %v345 = vmax.f32 %v217, 0.0
      %v346 = vmax.f32 %v218, 0.0
      %v347 = vmax.f32 %v219, 0.0
      %v348 = vmax.f32 %v220, 0.0
      %v349 = vmax.f32 %v221, 0.0
      %v350 = vmax.f32 %v222, 0.0
      %v351 = vmax.f32 %v223, 0.0
      %v352 = vmax.f32 %v224, 0.0
      %v353 = vmax.f32 %v225, 0.0
      %v354 = vmax.f32 %v226, 0.0
      %v355 = vmax.f32 %v227, 0.0
      %v356 = vmax.f32 %v228, 0.0
      %v357 = vmax.f32 %v229, 0.0
      %v358 = vmax.f32 %v230, 0.0
      %v359 = vmax.f32 %v231, 0.0
      %v360 = vmax.f32 %v232, 0.0
      %v361 = vmax.f32 %v233, 0.0
      %v362 = vmax.f32 %v234, 0.0
      %v363 = vmax.f32 %v235, 0.0
      %v364 = vmax.f32 %v236, 0.0
      %v365 = vmax.f32 %v237, 0.0
      %v366 = vmax.f32 %v238, 0.0
      %v367 = vmax.f32 %v239, 0.0
      %v368 = vmax.f32 %v240, 0.0
      %v369 = vmax.f32 %v241, 0.0
      %v370 = vmax.f32 %v242, 0.0
      %v371 = vmax.f32 %v243, 0.0
      %v372 = vmax.f32 %v244, 0.0
      %v373 = vmax.f32 %v245, 0.0
      %v374 = vmax.f32 %v246, 0.0
      %v375 = vmax.f32 %v247, 0.0
      %v376 = vmax.f32 %v248, 0.0
      %v377 = vmax.f32 %v249, 0.0
      %v378 = vmax.f32 %v250, 0.0
      %v379 = vmax.f32 %v251, 0.0
      %v380 = vmax.f32 %v252, 0.0
      %v381 = vmin.f32 %v253, 4.0
      %v382 = vmin.f32 %v254, 4.0
      %v383 = vmin.f32 %v255, 4.0
      %v384 = vmin.f32 %v256, 4.0
      %v385 = vmin.f32 %v257, 4.0
      %v386 = vmin.f32 %v258, 4.0
      %v387 = vmin.f32 %v259, 4.0
      %v388 = vmin.f32 %v260, 4.0
      %v389 = vmin.f32 %v261, 4.0
      %v390 = vmin.f32 %v262, 4.0
      %v391 = vmin.f32 %v263, 4.0
      %v392 = vmin.f32 %v264, 4.0
      %v393 = vmin.f32 %v265, 4.0
      %v394 = vmin.f32 %v266, 4.0
      %v395 = vmin.f32 %v267, 4.0
      %v396 = vmin.f32 %v268, 4.0
      %v397 = vmin.f32 %v269, 4.0
      %v398 = vmin.f32 %v270, 4.0
      %v399 = vmin.f32 %v271, 4.0
      %v400 = vmin.f32 %v272, 4.0
      %v401 = vmin.f32 %v273, 4.0
      %v402 = vmin.f32 %v274, 4.0
      %v403 = vmin.f32 %v275, 4.0
      %v404 = vmin.f32 %v276, 4.0
      %v405 = vmin.f32 %v277, 4.0
      %v406 = vmin.f32 %v278, 4.0
      %v407 = vmin.f32 %v279, 4.0
      %v408 = vmin.f32 %v280, 4.0
      %v409 = vmin.f32 %v281, 4.0
      %v410 = vmin.f32 %v282, 4.0
      %v411 = vmin.f32 %v283, 4.0
      %v412 = vmin.f32 %v284, 4.0
      %v413 = vmin.f32 %v285, 4.0
      %v414 = vmin.f32 %v286, 4.0
      %v415 = vmin.f32 %v287, 4.0
      %v416 = vmin.f32 %v288, 4.0
      %v417 = vmin.f32 %v289, 4.0
      %v418 = vmin.f32 %v290, 4.0
      %v419 = vmin.f32 %v291, 4.0
      %v420 = vmin.f32 %v292, 4.0
      %v421 = vmin.f32 %v293, 4.0
      %v422 = vmin.f32 %v294, 4.0
      %v423 = vmin.f32 %v295, 4.0
      %v424 = vmin.f32 %v296, 4.0
      %v425 = vmin.f32 %v297, 4.0
      %v426 = vmin.f32 %v298, 4.0
      %v427 = vmin.f32 %v299, 4.0
      %v428 = vmin.f32 %v300, 4.0
      %v429 = vmin.f32 %v301, 4.0
      %v430 = vmin.f32 %v302, 4.0
      %v431 = vmin.f32 %v303, 4.0
      %v432 = vmin.f32 %v304, 4.0
      %v433 = vmin.f32 %v305, 4.0
      %v434 = vmin.f32 %v306, 4.0
      %v435 = vmin.f32 %v307, 4.0
      %v436 = vmin.f32 %v308, 4.0
      %v437 = vmin.f32 %v309, 4.0
      %v438 = vmin.f32 %v310, 4.0
      %v439 = vmin.f32 %v311, 4.0
      %v440 = vmin.f32 %v312, 4.0
      %v441 = vmin.f32 %v313, 4.0
      %v442 = vmin.f32 %v314, 4.0
      %v443 = vmin.f32 %v315, 4.0
      %v444 = vmin.f32 %v316, 4.0
      %v445 = vmin.f32 %v317, 4.0
      %v446 = vmin.f32 %v318, 4.0
      %v447 = vmin.f32 %v319, 4.0
      %v448 = vmin.f32 %v320, 4.0
      %v449 = vmin.f32 %v321, 4.0
      %v450 = vmin.f32 %v322, 4.0
      %v451 = vmin.f32 %v323, 4.0
      %v452 = vmin.f32 %v324, 4.0
      %v453 = vmin.f32 %v325, 4.0
      %v454 = vmin.f32 %v326, 4.0
      %v455 = vmin.f32 %v327, 4.0
      %v456 = vmin.f32 %v328, 4.0
      %v457 = vmin.f32 %v329, 4.0
      %v458 = vmin.f32 %v330, 4.0
      %v459 = vmin.f32 %v331, 4.0
      %v460 = vmin.f32 %v332, 4.0
      %v461 = vmin.f32 %v333, 4.0
      %v462 = vmin.f32 %v334, 4.0
      %v463 = vmin.f32 %v335, 4.0
      %v464 = vmin.f32 %v336, 4.0
      %v465 = vmin.f32 %v337, 4.0
      %v466 = vmin.f32 %v338, 4.0
      %v467 = vmin.f32 %v339, 4.0
      %v468 = vmin.f32 %v340, 4.0
      %v469 = vmin.f32 %v341, 4.0
      %v470 = vmin.f32 %v342, 4.0
      %v471 = vmin.f32 %v343, 4.0
      %v472 = vmin.f32 %v344, 4.0
      %v473 = vmin.f32 %v345, 4.0
      %v474 = vmin.f32 %v346, 4.0
      %v475 = vmin.f32 %v347, 4.0
      %v476 = vmin.f32 %v348, 4.0
      %v477 = vmin.f32 %v349, 4.0
      %v478 = vmin.f32 %v350, 4.0
      %v479 = vmin.f32 %v351, 4.0
      %v480 = vmin.f32 %v352, 4.0
      %v481 = vmin.f32 %v353, 4.0
      %v482 = vmin.f32 %v354, 4.0
      %v483 = vmin.f32 %v355, 4.0
      %v484 = vmin.f32 %v356, 4.0
      %v485 = vmin.f32 %v357, 4.0
      %v486 = vmin.f32 %v358, 4.0
      %v487 = vmin.f32 %v359, 4.0
      %v488 = vmin.f32 %v360, 4.0
      %v489 = vmin.f32 %v361, 4.0
      %v490 = vmin.f32 %v362, 4.0
      %v491 = vmin.f32 %v363, 4.0
      %v492 = vmin.f32 %v364, 4.0
      %v493 = vmin.f32 %v365, 4.0
      %v494 = vmin.f32 %v366, 4.0
      %v495 = vmin.f32 %v367, 4.0
      %v496 = vmin.f32 %v368, 4.0
      %v497 = vmin.f32 %v369, 4.0
      %v498 = vmin.f32 %v370, 4.0
      %v499 = vmin.f32 %v371, 4.0
      %v500 = vmin.f32 %v372, 4.0
      %v501 = vmin.f32 %v373, 4.0
      %v502 = vmin.f32 %v374, 4.0
      %v503 = vmin.f32 %v375, 4.0
      %v504 = vmin.f32 %v376, 4.0
      %v505 = vmin.f32 %v377, 4.0
      %v506 = vmin.f32 %v378, 4.0
      %v507 = vmin.f32 %v379, 4.0
      %v508 = vmin.f32 %v380, 4.0
      %v509 = vadd.f32 %v381, 0.5
      %v510 = vadd.f32 %v382, 0.5
      %v511 = vadd.f32 %v383, 0.5
      %v512 = vadd.f32 %v384, 0.5
      %v513 = vadd.f32 %v385, 0.5
      %v514 = vadd.f32 %v386, 0.5
      %v515 = vadd.f32 %v387, 0.5
      %v516 = vadd.f32 %v388, 0.5
      %v517 = vadd.f32 %v389, 0.5
      %v518 = vadd.f32 %v390, 0.5
      %v519 = vadd.f32 %v391, 0.5
      %v520 = vadd.f32 %v392, 0.5
      %v521 = vadd.f32 %v393, 0.5
      %v522 = vadd.f32 %v394, 0.5
      %v523 = vadd.f32 %v395, 0.5
      %v524 = vadd.f32 %v396, 0.5
      %v525 = vadd.f32 %v397, 0.5
      %v526 = vadd.f32 %v398, 0.5
      %v527 = vadd.f32 %v399, 0.5
      %v528 = vadd.f32 %v400, 0.5
      %v529 = vadd.f32 %v401, 0.5
      %v530 = vadd.f32 %v402, 0.5
      %v531 = vadd.f32 %v403, 0.5
      %v532 = vadd.f32 %v404, 0.5
      %v533 = vadd.f32 %v405, 0.5
      %v534 = vadd.f32 %v406, 0.5
      %v535 = vadd.f32 %v407, 0.5
      %v536 = vadd.f32 %v408, 0.5
      %v537 = vadd.f32 %v409, 0.5
      %v538 = vadd.f32 %v410, 0.5
      %v539 = vadd.f32 %v411, 0.5
      %v540 = vadd.f32 %v412, 0.5
      %v541 = vadd.f32 %v413, 0.5
      %v542 = vadd.f32 %v414, 0.5
      %v543 = vadd.f32 %v415, 0.5
      %v544 = vadd.f32 %v416, 0.5
      %v545 = vadd.f32 %v417, 0.5
      %v546 = vadd.f32 %v418, 0.5
      %v547 = vadd.f32 %v419, 0.5
      %v548 = vadd.f32 %v420, 0.5
      %v549 = vadd.f32 %v421, 0.5
      %v550 = vadd.f32 %v422, 0.5
      %v551 = vadd.f32 %v423, 0.5
      %v552 = vadd.f32 %v424, 0.5
      %v553 = vadd.f32 %v425, 0.5
      %v554 = vadd.f32 %v426, 0.5
      %v555 = vadd.f32 %v427, 0.5
      %v556 = vadd.f32 %v428, 0.5
      %v557 = vadd.f32 %v429, 0.5
      %v558 = vadd.f32 %v430, 0.5
      %v559 = vadd.f32 %v431, 0.5
      %v560 = vadd.f32 %v432, 0.5
      %v561 = vadd.f32 %v433, 0.5
      %v562 = vadd.f32 %v434, 0.5
      %v563 = vadd.f32 %v435, 0.5
      %v564 = vadd.f32 %v436, 0.5
      %v565 = vadd.f32 %v437, 0.5
      %v566 = vadd.f32 %v438, 0.5
      %v567 = vadd.f32 %v439, 0.5
      %v568 = vadd.f32 %v440, 0.5
      %v569 = vadd.f32 %v441, 0.5
      %v570 = vadd.f32 %v442, 0.5
      %v571 = vadd.f32 %v443, 0.5
      %v572 = vadd.f32 %v444, 0.5
      %v573 = vadd.f32 %v445, 0.5
      %v574 = vadd.f32 %v446, 0.5
      %v575 = vadd.f32 %v447, 0.5
      %v576 = vadd.f32 %v448, 0.5
      %v577 = vadd.f32 %v449, 0.5
      %v578 = vadd.f32 %v450, 0.5
      %v579 = vadd.f32 %v451, 0.5
      %v580 = vadd.f32 %v452, 0.5
      %v581 = vadd.f32 %v453, 0.5
      %v582 = vadd.f32 %v454, 0.5
      %v583 = vadd.f32 %v455, 0.5
      %v584 = vadd.f32 %v456, 0.5
      %v585 = vadd.f32 %v457, 0.5
      %v586 = vadd.f32 %v458, 0.5
      %v587 = vadd.f32 %v459, 0.5
      %v588 = vadd.f32 %v460, 0.5
      %v589 = vadd.f32 %v461, 0.5
      %v590 = vadd.f32 %v462, 0.5
      %v591 = vadd.f32 %v463, 0.5
      %v592 = vadd.f32 %v464, 0.5
      %v593 = vadd.f32 %v465, 0.5
      %v594 = vadd.f32 %v466, 0.5
      %v595 = vadd.f32 %v467, 0.5
      %v596 = vadd.f32 %v468, 0.5
      %v597 = vadd.f32 %v469, 0.5
      %v598 = vadd.f32 %v470, 0.5
      %v599 = vadd.f32 %v471, 0.5
      %v600 = vadd.f32 %v472, 0.5
      %v601 = vadd.f32 %v473, 0.5
      %v602 = vadd.f32 %v474, 0.5
      %v603 = vadd.f32 %v475, 0.5
      %v604 = vadd.f32 %v476, 0.5
      %v605 = vadd.f32 %v477, 0.5
      %v606 = vadd.f32 %v478, 0.5
      %v607 = vadd.f32 %v479, 0.5
      %v608 = vadd.f32 %v480, 0.5
      %v609 = vadd.f32 %v481, 0.5
      %v610 = vadd.f32 %v482, 0.5
      %v611 = vadd.f32 %v483, 0.5
      %v612 = vadd.f32 %v484, 0.5
      %v613 = vadd.f32 %v485, 0.5
      %v614 = vadd.f32 %v486, 0.5
      %v615 = vadd.f32 %v487, 0.5
      %v616 = vadd.f32 %v488, 0.5
      %v617 = vadd.f32 %v489, 0.5
      %v618 = vadd.f32 %v490, 0.5
      %v619 = vadd.f32 %v491, 0.5
      %v620 = vadd.f32 %v492, 0.5
      %v621 = vadd.f32 %v493, 0.5
      %v622 = vadd.f32 %v494, 0.5
      %v623 = vadd.f32 %v495, 0.5
      %v624 = vadd.f32 %v496, 0.5
      %v625 = vadd.f32 %v497, 0.5
      %v626 = vadd.f32 %v498, 0.5
      %v627 = vadd.f32 %v499, 0.5
      %v628 = vadd.f32 %v500, 0.5
      %v629 = vadd.f32 %v501, 0.5
      %v630 = vadd.f32 %v502, 0.5
      %v631 = vadd.f32 %v503, 0.5
      %v632 = vadd.f32 %v504, 0.5
      %v633 = vadd.f32 %v505, 0.5
      %v634 = vadd.f32 %v506, 0.5
      %v635 = vadd.f32 %v507, 0.5
      %v636 = vadd.f32 %v508, 0.5
      %v637 = vfloor.f32 %v509
      %v638 = vfloor.f32 %v510
      %v639 = vfloor.f32 %v511
      %v640 = vfloor.f32 %v512
      %v641 = vfloor.f32 %v513
      %v642 = vfloor.f32 %v514
      %v643 = vfloor.f32 %v515
      %v644 = vfloor.f32 %v516
      %v645 = vfloor.f32 %v517
      %v646 = vfloor.f32 %v518
      %v647 = vfloor.f32 %v519
      %v648 = vfloor.f32 %v520
      %v649 = vfloor.f32 %v521
      %v650 = vfloor.f32 %v522
      %v651 = vfloor.f32 %v523
      %v652 = vfloor.f32 %v524
      %v653 = vfloor.f32 %v525
      %v654 = vfloor.f32 %v526
      %v655 = vfloor.f32 %v527
      %v656 = vfloor.f32 %v528
      %v657 = vfloor.f32 %v529
      %v658 = vfloor.f32 %v530
      %v659 = vfloor.f32 %v531
      %v660 = vfloor.f32 %v532
      %v661 = vfloor.f32 %v533
      %v662 = vfloor.f32 %v534
      %v663 = vfloor.f32 %v535
      %v664 = vfloor.f32 %v536
      %v665 = vfloor.f32 %v537
      %v666 = vfloor.f32 %v538
      %v667 = vfloor.f32 %v539
      %v668 = vfloor.f32 %v540
      %v669 = vfloor.f32 %v541
      %v670 = vfloor.f32 %v542
      %v671 = vfloor.f32 %v543
      %v672 = vfloor.f32 %v544
      %v673 = vfloor.f32 %v545
      %v674 = vfloor.f32 %v546
      %v675 = vfloor.f32 %v547
      %v676 = vfloor.f32 %v548
      %v677 = vfloor.f32 %v549
      %v678 = vfloor.f32 %v550
      %v679 = vfloor.f32 %v551
      %v680 = vfloor.f32 %v552
      %v681 = vfloor.f32 %v553
      %v682 = vfloor.f32 %v554
      %v683 = vfloor.f32 %v555
      %v684 = vfloor.f32 %v556
      %v685 = vfloor.f32 %v557
      %v686 = vfloor.f32 %v558
      %v687 = vfloor.f32 %v559
      %v688 = vfloor.f32 %v560
      %v689 = vfloor.f32 %v561
      %v690 = vfloor.f32 %v562
      %v691 = vfloor.f32 %v563
      %v692 = vfloor.f32 %v564
      %v693 = vfloor.f32 %v565
      %v694 = vfloor.f32 %v566
      %v695 = vfloor.f32 %v567
      %v696 = vfloor.f32 %v568
      %v697 = vfloor.f32 %v569
      %v698 = vfloor.f32 %v570
      %v699 = vfloor.f32 %v571
      %v700 = vfloor.f32 %v572
      %v701 = vfloor.f32 %v573
      %v702 = vfloor.f32 %v574
      %v703 = vfloor.f32 %v575
      %v704 = vfloor.f32 %v576
      %v705 = vfloor.f32 %v577
      %v706 = vfloor.f32 %v578
      %v707 = vfloor.f32 %v579
      %v708 = vfloor.f32 %v580
      %v709 = vfloor.f32 %v581
      %v710 = vfloor.f32 %v582
      %v711 = vfloor.f32 %v583
      %v712 = vfloor.f32 %v584
      %v713 = vfloor.f32 %v585
      %v714 = vfloor.f32 %v586
      %v715 = vfloor.f32 %v587
      %v716 = vfloor.f32 %v588
      %v717 = vfloor.f32 %v589
      %v718 = vfloor.f32 %v590
      %v719 = vfloor.f32 %v591
      %v720 = vfloor.f32 %v592
      %v721 = vfloor.f32 %v593
      %v722 = vfloor.f32 %v594
      %v723 = vfloor.f32 %v595
      %v724 = vfloor.f32 %v596
      %v725 = vfloor.f32 %v597
      %v726 = vfloor.f32 %v598
      %v727 = vfloor.f32 %v599
      %v728 = vfloor.f32 %v600
      %v729 = vfloor.f32 %v601
      %v730 = vfloor.f32 %v602
      %v731 = vfloor.f32 %v603
      %v732 = vfloor.f32 %v604
      %v733 = vfloor.f32 %v605
      %v734 = vfloor.f32 %v606
      %v735 = vfloor.f32 %v607
      %v736 = vfloor.f32 %v608
      %v737 = vfloor.f32 %v609
      %v738 = vfloor.f32 %v610
      %v739 = vfloor.f32 %v611
      %v740 = vfloor.f32 %v612
      %v741 = vfloor.f32 %v613
      %v742 = vfloor.f32 %v614
      %v743 = vfloor.f32 %v615
      %v744 = vfloor.f32 %v616
      %v745 = vfloor.f32 %v617
      %v746 = vfloor.f32 %v618
      %v747 = vfloor.f32 %v619
      %v748 = vfloor.f32 %v620
      %v749 = vfloor.f32 %v621
      %v750 = vfloor.f32 %v622
      %v751 = vfloor.f32 %v623
      %v752 = vfloor.f32 %v624
      %v753 = vfloor.f32 %v625
      %v754 = vfloor.f32 %v626
      %v755 = vfloor.f32 %v627
      %v756 = vfloor.f32 %v628
      %v757 = vfloor.f32 %v629
      %v758 = vfloor.f32 %v630
      %v759 = vfloor.f32 %v631
      %v760 = vfloor.f32 %v632
      %v761 = vfloor.f32 %v633
      %v762 = vfloor.f32 %v634
      %v763 = vfloor.f32 %v635
      %v764 = vfloor.f32 %v636
      %765 = vst [vmem:[%s123] sm:$0xff] %v637
      %766 = vst [vmem:[%s123 + $0x8] sm:$0xff] %v638
      %767 = vst [vmem:[%s123 + $0x10] sm:$0xff] %v639
      %768 = vst [vmem:[%s123 + $0x18] sm:$0xff] %v640
      %769 = vst [vmem:[%s123 + $0x20] sm:$0xff] %v641
      %770 = vst [vmem:[%s123 + $0x28] sm:$0xff] %v642
      %771 = vst [vmem:[%s123 + $0x30] sm:$0xff] %v643
      %772 = vst [vmem:[%s123 + $0x38] sm:$0xff] %v644
      %773 = vst [vmem:[%s123 + $0x40] sm:$0xff] %v645
      %774 = vst [vmem:[%s123 + $0x48] sm:$0xff] %v646
      %775 = vst [vmem:[%s123 + $0x50] sm:$0xff] %v647
      %776 = vst [vmem:[%s123 + $0x58] sm:$0xff] %v648
      %777 = vst [vmem:[%s123 + $0x60] sm:$0xff] %v649
      %778 = vst [vmem:[%s123 + $0x68] sm:$0xff] %v650
      %779 = vst [vmem:[%s123 + $0x70] sm:$0xff] %v651
      %780 = vst [vmem:[%s123 + $0x78] sm:$0xff] %v652
      %781 = vst [vmem:[%s123 + $0x80] sm:$0xff] %v653
      %782 = vst [vmem:[%s123 + $0x88] sm:$0xff] %v654
      %783 = vst [vmem:[%s123 + $0x90] sm:$0xff] %v655
      %784 = vst [vmem:[%s123 + $0x98] sm:$0xff] %v656
      %785 = vst [vmem:[%s123 + $0xa0] sm:$0xff] %v657
      %786 = vst [vmem:[%s123 + $0xa8] sm:$0xff] %v658
      %787 = vst [vmem:[%s123 + $0xb0] sm:$0xff] %v659
      %788 = vst [vmem:[%s123 + $0xb8] sm:$0xff] %v660
      %789 = vst [vmem:[%s123 + $0xc0] sm:$0xff] %v661
      %790 = vst [vmem:[%s123 + $0xc8] sm:$0xff] %v662
      %791 = vst [vmem:[%s123 + $0xd0] sm:$0xff] %v663
      %792 = vst [vmem:[%s123 + $0xd8] sm:$0xff] %v664
      %793 = vst [vmem:[%s123 + $0xe0] sm:$0xff] %v665
      %794 = vst [vmem:[%s123 + $0xe8] sm:$0xff] %v666
      %795 = vst [vmem:[%s123 + $0xf0] sm:$0xff] %v667
      %796 = vst [vmem:[%s123 + $0xf8] sm:$0xff] %v668
      %797 = vst [vmem:[%s123 + $0x100] sm:$0xff] %v669
      %798 = vst [vmem:[%s123 + $0x108] sm:$0xff] %v670
      %799 = vst [vmem:[%s123 + $0x110] sm:$0xff] %v671
      %800 = vst [vmem:[%s123 + $0x118] sm:$0xff] %v672
      %801 = vst [vmem:[%s123 + $0x120] sm:$0xff] %v673
      %802 = vst [vmem:[%s123 + $0x128] sm:$0xff] %v674
      %803 = vst [vmem:[%s123 + $0x130] sm:$0xff] %v675
      %804 = vst [vmem:[%s123 + $0x138] sm:$0xff] %v676
      %805 = vst [vmem:[%s123 + $0x140] sm:$0xff] %v677
      %806 = vst [vmem:[%s123 + $0x148] sm:$0xff] %v678
      %807 = vst [vmem:[%s123 + $0x150] sm:$0xff] %v679
      %808 = vst [vmem:[%s123 + $0x158] sm:$0xff] %v680
      %809 = vst [vmem:[%s123 + $0x160] sm:$0xff] %v681
      %810 = vst [vmem:[%s123 + $0x168] sm:$0xff] %v682
      %811 = vst [vmem:[%s123 + $0x170] sm:$0xff] %v683
      %812 = vst [vmem:[%s123 + $0x178] sm:$0xff] %v684
      %813 = vst [vmem:[%s123 + $0x180] sm:$0xff] %v685
      %814 = vst [vmem:[%s123 + $0x188] sm:$0xff] %v686
      %815 = vst [vmem:[%s123 + $0x190] sm:$0xff] %v687
      %816 = vst [vmem:[%s123 + $0x198] sm:$0xff] %v688
      %817 = vst [vmem:[%s123 + $0x1a0] sm:$0xff] %v689
      %818 = vst [vmem:[%s123 + $0x1a8] sm:$0xff] %v690
      %819 = vst [vmem:[%s123 + $0x1b0] sm:$0xff] %v691
      %820 = vst [vmem:[%s123 + $0x1b8] sm:$0xff] %v692
      %821 = vst [vmem:[%s123 + $0x1c0] sm:$0xff] %v693
      %822 = vst [vmem:[%s123 + $0x1c8] sm:$0xff] %v694
      %823 = vst [vmem:[%s123 + $0x1d0] sm:$0xff] %v695
      %824 = vst [vmem:[%s123 + $0x1d8] sm:$0xff] %v696
      %825 = vst [vmem:[%s123 + $0x1e0] sm:$0xff] %v697
      %826 = vst [vmem:[%s123 + $0x1e8] sm:$0xff] %v698
      %827 = vst [vmem:[%s123 + $0x1f0] sm:$0xff] %v699
      %828 = vst [vmem:[%s123 + $0x1f8] sm:$0xff] %v700
      %829 = vst [vmem:[%s123 + $0x200] sm:$0xff] %v701
      %830 = vst [vmem:[%s123 + $0x208] sm:$0xff] %v702
      %831 = vst [vmem:[%s123 + $0x210] sm:$0xff] %v703
      %832 = vst [vmem:[%s123 + $0x218] sm:$0xff] %v704
      %833 = vst [vmem:[%s123 + $0x220] sm:$0xff] %v705
      %834 = vst [vmem:[%s123 + $0x228] sm:$0xff] %v706
      %835 = vst [vmem:[%s123 + $0x230] sm:$0xff] %v707
      %836 = vst [vmem:[%s123 + $0x238] sm:$0xff] %v708
      %837 = vst [vmem:[%s123 + $0x240] sm:$0xff] %v709
      %838 = vst [vmem:[%s123 + $0x248] sm:$0xff] %v710
      %839 = vst [vmem:[%s123 + $0x250] sm:$0xff] %v711
      %840 = vst [vmem:[%s123 + $0x258] sm:$0xff] %v712
      %841 = vst [vmem:[%s123 + $0x260] sm:$0xff] %v713
      %842 = vst [vmem:[%s123 + $0x268] sm:$0xff] %v714
      %843 = vst [vmem:[%s123 + $0x270] sm:$0xff] %v715
      %844 = vst [vmem:[%s123 + $0x278] sm:$0xff] %v716
      %845 = vst [vmem:[%s123 + $0x280] sm:$0xff] %v717
      %846 = vst [vmem:[%s123 + $0x288] sm:$0xff] %v718
      %847 = vst [vmem:[%s123 + $0x290] sm:$0xff] %v719
      %848 = vst [vmem:[%s123 + $0x298] sm:$0xff] %v720
      %849 = vst [vmem:[%s123 + $0x2a0] sm:$0xff] %v721
      %850 = vst [vmem:[%s123 + $0x2a8] sm:$0xff] %v722
      %851 = vst [vmem:[%s123 + $0x2b0] sm:$0xff] %v723
      %852 = vst [vmem:[%s123 + $0x2b8] sm:$0xff] %v724
      %853 = vst [vmem:[%s123 + $0x2c0] sm:$0xff] %v725
      %854 = vst [vmem:[%s123 + $0x2c8] sm:$0xff] %v726
      %855 = vst [vmem:[%s123 + $0x2d0] sm:$0xff] %v727
      %856 = vst [vmem:[%s123 + $0x2d8] sm:$0xff] %v728
      %857 = vst [vmem:[%s123 + $0x2e0] sm:$0xff] %v729
      %858 = vst [vmem:[%s123 + $0x2e8] sm:$0xff] %v730
      %859 = vst [vmem:[%s123 + $0x2f0] sm:$0xff] %v731
      %860 = vst [vmem:[%s123 + $0x2f8] sm:$0xff] %v732
      %861 = vst [vmem:[%s123 + $0x300] sm:$0xff] %v733
      %862 = vst [vmem:[%s123 + $0x308] sm:$0xff] %v734
      %863 = vst [vmem:[%s123 + $0x310] sm:$0xff] %v735
      %864 = vst [vmem:[%s123 + $0x318] sm:$0xff] %v736
      %865 = vst [vmem:[%s123 + $0x320] sm:$0xff] %v737
      %866 = vst [vmem:[%s123 + $0x328] sm:$0xff] %v738
      %867 = vst [vmem:[%s123 + $0x330] sm:$0xff] %v739
      %868 = vst [vmem:[%s123 + $0x338] sm:$0xff] %v740
      %869 = vst [vmem:[%s123 + $0x340] sm:$0xff] %v741
      %870 = vst [vmem:[%s123 + $0x348] sm:$0xff] %v742
      %871 = vst [vmem:[%s123 + $0x350] sm:$0xff] %v743
      %872 = vst [vmem:[%s123 + $0x358] sm:$0xff] %v744
      %873 = vst [vmem:[%s123 + $0x360] sm:$0xff] %v745
      %874 = vst [vmem:[%s123 + $0x368] sm:$0xff] %v746
      %875 = vst [vmem:[%s123 + $0x370] sm:$0xff] %v747
      %876 = vst [vmem:[%s123 + $0x378] sm:$0xff] %v748
      %877 = vst [vmem:[%s123 + $0x380] sm:$0xff] %v749
      %878 = vst [vmem:[%s123 + $0x388] sm:$0xff] %v750
      %879 = vst [vmem:[%s123 + $0x390] sm:$0xff] %v751
      %880 = vst [vmem:[%s123 + $0x398] sm:$0xff] %v752
      %881 = vst [vmem:[%s123 + $0x3a0] sm:$0xff] %v753
      %882 = vst [vmem:[%s123 + $0x3a8] sm:$0xff] %v754
      %883 = vst [vmem:[%s123 + $0x3b0] sm:$0xff] %v755
      %884 = vst [vmem:[%s123 + $0x3b8] sm:$0xff] %v756
      %885 = vst [vmem:[%s123 + $0x3c0] sm:$0xff] %v757
      %886 = vst [vmem:[%s123 + $0x3c8] sm:$0xff] %v758
      %887 = vst [vmem:[%s123 + $0x3d0] sm:$0xff] %v759
      %888 = vst [vmem:[%s123 + $0x3d8] sm:$0xff] %v760
      %889 = vst [vmem:[%s123 + $0x3e0] sm:$0xff] %v761
      %890 = vst [vmem:[%s123 + $0x3e8] sm:$0xff] %v762
      %891 = vst [vmem:[%s123 + $0x3f0] sm:$0xff] %v763
      %892 = vst [vmem:[%s123 + $0x3f8] sm:$0xff] %v764
      %s893 = smul.u32 4, %s12
      %p894 = scmp.lt.s32.totalorder %s893, 15
      %s895 = scalar_select %p894, %s893, 15
      %s896 = smul.addr %s895, 32
      %s897 = smul.addr %s896, 8
      %s898 = scalar_lea.vmem %s1, %s897
      // Predicated region
      $region25: #{multispike.1} parent=23 // pred_check
        %p899 = pneg %p56
      $region26: #{multispike.1} parent=23 // pred_check_branch
        %901 = sbr.rel (%p899) target = $region28
      $region27: #{multispike.1} parent=23 // pred_region
        %s902 = smul.u32 4, %s12
      $region28: #{multispike.1} parent=23 // pred_fallthru
        _
    $region24: #{multispike.1} parent=5 // pred_fallthru
      _
    %p903 = scmp.le.s32.totalorder 2, %s7
    // Predicated region
    $region29: #{multispike.1} parent=5 // pred_check
      %p904 = pneg %p903
    $region30: #{multispike.1} parent=5 // pred_check_branch
      %906 = sbr.rel (%p904) target = $region32
    $region31: #{multispike.1} parent=5 // pred_region
      %s907 = ssub.s32 %s7, 2
      // Predicated region
      $region33: #{multispike.1} parent=31 // pred_check
        %p908 = pneg %p62
      $region34: #{multispike.1} parent=31 // pred_check_branch
        %910 = sbr.rel (%p908) target = $region36
      $region35: #{multispike.1} parent=31 // pred_region
        %s911 = smul.u32 4, %s13
        %p912 = scmp.lt.s32.totalorder %s911, 15
        %s913 = scalar_select %p912, %s911, 15
        %s914 = smul.addr %s913, 32
        %s915 = smul.addr %s914, 8
        %s916 = scalar_lea.vmem %s1, %s915
      $region36: #{multispike.1} parent=31 // pred_fallthru
        _
    $region32: #{multispike.1} parent=5 // pred_fallthru
      _
  $region6: #{multispike.1} parent=0 // loop_footer
    %s11 = sadd.s32 1, %s7
  $region7: #{multispike.1} parent=0 // loop_footer_branch
    %6 = sbr.rel target = $region3
  $region8: #{multispike.1} parent=0 // loop_exit
    _

</llo_original>
